<compile_context>
chip_gen: v7x
topology: tpu7x:2x2x1
jax: 0.10.0
libtpu: 0.0.40
codegen_flags: <defaults>
</compile_context>

<pallas_src>
import jax
import jax.numpy as jnp
from jax.experimental import pallas as pl
from jax.experimental.pallas import tpu as pltpu


DEFAULT_MLP_SIZE = 64
_LANE = 128
_SUBLANE = 8
_MAX_TILE_B = 1024         # rows per grid step (bounded VMEM, deep pipeline)


def _round_up(x, m):
    return (x + m - 1) // m * m


def _head_kernel_masked(x_ref, w1_ref, b1_ref, w2_ref, b2_ref, mask_ref, out_ref):
    # Two fused MXU matmuls + bias + ReLU + mask. Accumulation is f32
    # regardless of the (possibly bf16) streamed input / weight dtype.
    h = jnp.dot(x_ref[...], w1_ref[...], preferred_element_type=jnp.float32)
    h = jnp.maximum(h + b1_ref[...], 0.0)                       # ReLU
    logits = jnp.dot(h.astype(w2_ref.dtype), w2_ref[...],
                     preferred_element_type=jnp.float32)
    logits = logits + b2_ref[...]
    logits = jnp.where(mask_ref[...] != 0, logits, jnp.float32(-1e9))
    out_ref[...] = logits.astype(out_ref.dtype)


def _head_kernel_nomask(x_ref, w1_ref, b1_ref, w2_ref, b2_ref, out_ref):
    h = jnp.dot(x_ref[...], w1_ref[...], preferred_element_type=jnp.float32)
    h = jnp.maximum(h + b1_ref[...], 0.0)                       # ReLU
    logits = jnp.dot(h.astype(w2_ref.dtype), w2_ref[...],
                     preferred_element_type=jnp.float32)
    out_ref[...] = (logits + b2_ref[...]).astype(out_ref.dtype)


def recurrent_resource_action_head(x, w1, b1, w2, b2, masks=None, *,
                                   compute_dtype=jnp.float32, tile_b=None):
    """x: [B, in_dim]. Returns masked logits [B, out_dim] f32.

    compute_dtype: dtype used to stream x / W1 / W2 (use jnp.bfloat16 on
    v6e/v7x to halve the dominant HBM traffic; accumulation stays f32).
    """
    B, in_dim = x.shape
    mlp_size = w1.shape[1]
    out_dim = w2.shape[1]

    # ---- batch tiling -----------------------------------------------------
    # Multiple grid steps restore software pipelining (DMA hidden behind the
    # matmuls) and allow the grid to be sharded across v7x's 2 TensorCores.
    # Tile is a multiple of 32 (covers (8,128) f32 and (32,128) int8 packing).
    b8 = _round_up(B, _SUBLANE)
    if tile_b is None:
        tile_b = _MAX_TILE_B
    n_steps = pl.cdiv(b8, tile_b)
    tile_b = _round_up(pl.cdiv(b8, n_steps), 32)
    b_pad = tile_b * n_steps

    # ---- lane-dense output ------------------------------------------------
    # out_dim (e.g. 16) is lane-sparse; pad to a multiple of 128 so output and
    # mask blocks get full, unmasked vector stores. Sliced off on return.
    out_pad = _round_up(out_dim, _LANE)

    xc = jnp.pad(x.astype(compute_dtype), ((0, b_pad - B), (0, 0)))
    w1c = w1.astype(compute_dtype)
    w2c = jnp.pad(w2, ((0, 0), (0, out_pad - out_dim))).astype(compute_dtype)
    b1_2d = b1.reshape(1, mlp_size).astype(jnp.float32)
    b2_2d = jnp.pad(b2.reshape(1, out_dim),
                    ((0, 0), (0, out_pad - out_dim))).astype(jnp.float32)

    have_mask = masks is not None
    if have_mask:
        masks_i8 = (masks > 0).astype(jnp.int8)        # 4x less mask traffic
        masks_i8 = jnp.pad(masks_i8, ((0, b_pad - B), (0, out_pad - out_dim)))

    # ---- cost hint for XLA's scheduler -------------------------------------
    itemsize = jnp.dtype(compute_dtype).itemsize
    flops = 2 * b_pad * (in_dim * mlp_size + mlp_size * out_pad)
    bytes_accessed = (b_pad * in_dim * itemsize             # x
                      + in_dim * mlp_size * itemsize        # W1
                      + mlp_size * out_pad * itemsize       # W2
                      + (mlp_size + out_pad) * 4            # biases
                      + (b_pad * out_pad if have_mask else 0)   # int8 mask
                      + b_pad * out_pad * 4)                # output
    cost = pl.CostEstimate(flops=int(flops), transcendentals=0,
                           bytes_accessed=int(bytes_accessed))

    # Constant index_maps keep W1/W2/biases resident in VMEM across steps.
    in_specs = [
        pl.BlockSpec((tile_b, in_dim), lambda i: (i, 0)),      # x tile
        pl.BlockSpec((in_dim, mlp_size), lambda i: (0, 0)),    # W1 (resident)
        pl.BlockSpec((1, mlp_size), lambda i: (0, 0)),         # b1
        pl.BlockSpec((mlp_size, out_pad), lambda i: (0, 0)),   # W2 (resident)
        pl.BlockSpec((1, out_pad), lambda i: (0, 0)),          # b2
    ]
    args = [xc, w1c, b1_2d, w2c, b2_2d]
    kernel = _head_kernel_nomask
    if have_mask:
        in_specs.append(pl.BlockSpec((tile_b, out_pad), lambda i: (i, 0)))
        args.append(masks_i8)
        kernel = _head_kernel_masked

    out = pl.pallas_call(
        kernel,
        out_shape=jax.ShapeDtypeStruct((b_pad, out_pad), jnp.float32),
        grid_spec=pltpu.PrefetchScalarGridSpec(
            num_scalar_prefetch=0,
            grid=(n_steps,),
            in_specs=in_specs,
            out_specs=pl.BlockSpec((tile_b, out_pad), lambda i: (i, 0)),
        ),
        compiler_params=pltpu.CompilerParams(
            dimension_semantics=("parallel",),
        ),
        cost_estimate=cost,
    )(*args)

    return out[:B, :out_dim]


def init_params(key, in_dim, mlp_size, out_dim):
    """Deterministic nn.Linear-style init (uniform(-1/sqrt(fan_in), 1/sqrt(fan_in)))."""
    k1, k2, k3, k4 = jax.random.split(key, 4)
    lim1 = 1.0 / (in_dim ** 0.5)
    lim2 = 1.0 / (mlp_size ** 0.5)
    w1 = jax.random.uniform(k1, (in_dim, mlp_size), jnp.float32, -lim1, lim1)
    b1 = jax.random.uniform(k2, (mlp_size,), jnp.float32, -lim1, lim1)
    w2 = jax.random.uniform(k3, (mlp_size, out_dim), jnp.float32, -lim2, lim2)
    b2 = jax.random.uniform(k4, (out_dim,), jnp.float32, -lim2, lim2)
    return w1, b1, w2, b2


if __name__ == "__main__":
    # Small shapes consistent with the module: batch=8, in_dim=32,
    # mlp_size=64 (DEFAULT_MLP_SIZE), out_dim=16 (max_count unused in forward).
    B, in_dim, mlp_size, out_dim = 8, 32, DEFAULT_MLP_SIZE, 16

    key = jax.random.PRNGKey(0)
    kx, km, kp = jax.random.split(key, 3)

    x = jax.random.normal(kx, (B, in_dim), jnp.float32)
    # binary validity mask over actions (1 = allowed, 0 = masked out)
    masks = (jax.random.uniform(km, (B, out_dim)) > 0.2).astype(jnp.float32)
    w1, b1, w2, b2 = init_params(kp, in_dim, mlp_size, out_dim)

    out = jax.block_until_ready(
        recurrent_resource_action_head(x, w1, b1, w2, b2, masks))

    # f32 reference check
    h_ref = jnp.maximum(x @ w1 + b1, 0.0)
    logits_ref = jnp.where(masks > 0.0, h_ref @ w2 + b2, -1e9)
    assert out.shape == (B, out_dim)
    assert jnp.allclose(out, logits_ref, atol=1e-5, rtol=1e-5)

    # No-mask path (skips the mask stream entirely).
    out_nm = jax.block_until_ready(
        recurrent_resource_action_head(x, w1, b1, w2, b2, None))
    assert jnp.allclose(out_nm, h_ref @ w2 + b2, atol=1e-5, rtol=1e-5)

    # Larger, ragged batch exercises the multi-step pipelined grid + padding.
    B2 = 2050
    kx2, km2 = jax.random.split(jax.random.PRNGKey(1))
    x2 = jax.random.normal(kx2, (B2, in_dim), jnp.float32)
    masks2 = (jax.random.uniform(km2, (B2, out_dim)) > 0.2).astype(jnp.float32)
    out2 = jax.block_until_ready(
        recurrent_resource_action_head(x2, w1, b1, w2, b2, masks2))
    h2 = jnp.maximum(x2 @ w1 + b1, 0.0)
    ref2 = jnp.where(masks2 > 0.0, h2 @ w2 + b2, -1e9)
    assert out2.shape == (B2, out_dim)
    assert jnp.allclose(out2, ref2, atol=1e-4, rtol=1e-4)

    # bf16 streaming path (bandwidth optimization for v6e/v7x); compare against
    # an identically-cast JAX reference with f32 accumulation.
    out_bf = jax.block_until_ready(
        recurrent_resource_action_head(x2, w1, b1, w2, b2, masks2,
                                       compute_dtype=jnp.bfloat16))
    h_bf = jnp.maximum(
        jnp.dot(x2.astype(jnp.bfloat16), w1.astype(jnp.bfloat16),
                preferred_element_type=jnp.float32) + b1, 0.0)
    ref_bf = jnp.dot(h_bf.astype(jnp.bfloat16), w2.astype(jnp.bfloat16),
                     preferred_element_type=jnp.float32) + b2
    ref_bf = jnp.where(masks2 > 0.0, ref_bf, -1e9)
    assert jnp.allclose(out_bf, ref_bf, atol=5e-2, rtol=5e-2)

    print("KERNEL_OK")
</pallas_src>

<mosaic_0001>
module attributes {stable_mosaic.version = 11 : i64} {
  func.func @_head_kernel_masked(%arg0: i32, %arg1: memref<32x32xf32, #tpu.memory_space<vmem>>, %arg2: memref<32x64xf32, #tpu.memory_space<vmem>>, %arg3: memref<1x64xf32, #tpu.memory_space<vmem>>, %arg4: memref<64x128xf32, #tpu.memory_space<vmem>>, %arg5: memref<1x128xf32, #tpu.memory_space<vmem>>, %arg6: memref<32x128xi8, #tpu.memory_space<vmem>>, %arg7: memref<32x128xf32, #tpu.memory_space<vmem>>) attributes {dimension_semantics = [#tpu.dimension_semantics<parallel>], iteration_bounds = array<i64: 1>, scalar_prefetch = 0 : i64, scratch_operands = 0 : i64, tpu.core_type = #tpu.core_type<tc>, window_params = [{transform_indices = @transform_0, window_bounds = array<i64: 32, 32>}, {pipeline_mode = #tpu.pipeline_mode<synchronous>, transform_indices = @transform_1, window_bounds = array<i64: 32, 64>}, {pipeline_mode = #tpu.pipeline_mode<synchronous>, transform_indices = @transform_2, window_bounds = array<i64: 1, 64>}, {pipeline_mode = #tpu.pipeline_mode<synchronous>, transform_indices = @transform_3, window_bounds = array<i64: 64, 128>}, {pipeline_mode = #tpu.pipeline_mode<synchronous>, transform_indices = @transform_4, window_bounds = array<i64: 1, 128>}, {transform_indices = @transform_5, window_bounds = array<i64: 32, 128>}, {transform_indices = @transform_6, window_bounds = array<i64: 32, 128>}]} {
    %c0 = arith.constant 0 : index
    %c0_0 = arith.constant 0 : index
    %0 = vector.load %arg1[%c0, %c0_0] : memref<32x32xf32, #tpu.memory_space<vmem>>, vector<32x32xf32>
    %c0_1 = arith.constant 0 : index
    %c0_2 = arith.constant 0 : index
    %1 = vector.load %arg2[%c0_1, %c0_2] : memref<32x64xf32, #tpu.memory_space<vmem>>, vector<32x64xf32>
    %cst = arith.constant dense<0.000000e+00> : vector<32x64xf32>
    %2 = tpu.matmul %0, %1, %cst {dimension_numbers = #tpu.dot_dimension_numbers<[1], [0], [0], [1], [0, 0, 1, 1], [], []>} : vector<32x32xf32>, vector<32x64xf32>, vector<32x64xf32> -> vector<32x64xf32>
    %c0_3 = arith.constant 0 : index
    %c0_4 = arith.constant 0 : index
    %3 = vector.load %arg3[%c0_3, %c0_4] : memref<1x64xf32, #tpu.memory_space<vmem>>, vector<1x64xf32>
    %4 = vector.broadcast %3 : vector<1x64xf32> to vector<32x64xf32>
    %5 = arith.addf %2, %4 : vector<32x64xf32>
    %cst_5 = arith.constant 0.000000e+00 : f32
    %6 = vector.broadcast %cst_5 : f32 to vector<32x64xf32>
    %7 = arith.maximumf %5, %6 : vector<32x64xf32>
    %c0_6 = arith.constant 0 : index
    %c0_7 = arith.constant 0 : index
    %8 = vector.load %arg4[%c0_6, %c0_7] : memref<64x128xf32, #tpu.memory_space<vmem>>, vector<64x128xf32>
    %cst_8 = arith.constant dense<0.000000e+00> : vector<32x128xf32>
    %9 = tpu.matmul %7, %8, %cst_8 {dimension_numbers = #tpu.dot_dimension_numbers<[1], [0], [0], [1], [0, 0, 1, 1], [], []>} : vector<32x64xf32>, vector<64x128xf32>, vector<32x128xf32> -> vector<32x128xf32>
    %c0_9 = arith.constant 0 : index
    %c0_10 = arith.constant 0 : index
    %10 = vector.load %arg5[%c0_9, %c0_10] : memref<1x128xf32, #tpu.memory_space<vmem>>, vector<1x128xf32>
    %11 = vector.broadcast %10 : vector<1x128xf32> to vector<32x128xf32>
    %12 = arith.addf %9, %11 : vector<32x128xf32>
    %c0_11 = arith.constant 0 : index
    %c0_12 = arith.constant 0 : index
    %13 = vector.load %arg6[%c0_11, %c0_12] : memref<32x128xi8, #tpu.memory_space<vmem>>, vector<32x128xi8>
    %c0_i8 = arith.constant 0 : i8
    %14 = vector.broadcast %c0_i8 : i8 to vector<32x128xi8>
    %15 = arith.cmpi ne, %13, %14 : vector<32x128xi8>
    %cst_13 = arith.constant -1.000000e+09 : f32
    %16 = vector.broadcast %cst_13 : f32 to vector<32x128xf32>
    %17 = arith.select %15, %12, %16 : vector<32x128xi1>, vector<32x128xf32>
    %c0_14 = arith.constant 0 : index
    %c0_15 = arith.constant 0 : index
    %18 = vector.load %arg7[%c0_14, %c0_15] : memref<32x128xf32, #tpu.memory_space<vmem>>, vector<32x128xf32>
    tpu.vector_store %arg7[%c0_14, %c0_15], %17 {strides = array<i32>} : memref<32x128xf32, #tpu.memory_space<vmem>>, vector<32x128xf32>,
    return
  }
  func.func @transform_0(%arg0: i32) -> (i32, i32) {
    %c0_i32 = arith.constant 0 : i32
    %c0_i32_0 = arith.constant 0 : i32
    return %arg0, %c0_i32 : i32, i32
  }
  func.func @transform_1(%arg0: i32) -> (i32, i32) {
    %c0_i32 = arith.constant 0 : i32
    %c0_i32_0 = arith.constant 0 : i32
    %c0_i32_1 = arith.constant 0 : i32
    return %c0_i32, %c0_i32_0 : i32, i32
  }
  func.func @transform_2(%arg0: i32) -> (i32, i32) {
    %c0_i32 = arith.constant 0 : i32
    %c0_i32_0 = arith.constant 0 : i32
    %c0_i32_1 = arith.constant 0 : i32
    return %c0_i32, %c0_i32_0 : i32, i32
  }
  func.func @transform_3(%arg0: i32) -> (i32, i32) {
    %c0_i32 = arith.constant 0 : i32
    %c0_i32_0 = arith.constant 0 : i32
    %c0_i32_1 = arith.constant 0 : i32
    return %c0_i32, %c0_i32_0 : i32, i32
  }
  func.func @transform_4(%arg0: i32) -> (i32, i32) {
    %c0_i32 = arith.constant 0 : i32
    %c0_i32_0 = arith.constant 0 : i32
    %c0_i32_1 = arith.constant 0 : i32
    return %c0_i32, %c0_i32_0 : i32, i32
  }
  func.func @transform_5(%arg0: i32) -> (i32, i32) {
    %c0_i32 = arith.constant 0 : i32
    %c0_i32_0 = arith.constant 0 : i32
    return %arg0, %c0_i32 : i32, i32
  }
  func.func @transform_6(%arg0: i32) -> (i32, i32) {
    %c0_i32 = arith.constant 0 : i32
    %c0_i32_0 = arith.constant 0 : i32
    return %arg0, %c0_i32 : i32, i32
  }
}

</mosaic_0001>

<llo_original>
// kernel: tpu_custom_call.1
$region0: #{tpu_custom_call.1}
  #allocation0 [shape = 'u32[]', space=smem, size = 0x4, offset = 0x4, fixed_abs, tag = 'smem constant byte address 0x4 - core index']
  #allocation1 [shape = 'u32[144,128]{1,0:T(1,128)}', space=vmem, size = 0x12000, scoped, tag = 'internal scratch']
  %s0 = inlined_call_operand.hbm [shape: f32[32,32], index: 0, kind: input, shape index: {}]
  %s1 = inlined_call_operand.hbm [shape: f32[32,64], index: 1, kind: input, shape index: {}]
  %s2 = inlined_call_operand.vmem [shape: f32[1,64], index: 2, kind: input, shape index: {}]
  %s3 = inlined_call_operand.hbm [shape: f32[64,128], index: 3, kind: input, shape index: {}]
  %s4 = inlined_call_operand.vmem [shape: f32[1,128], index: 4, kind: input, shape index: {}]
  %s5 = inlined_call_operand.vmem [shape: s8[32,128], index: 5, kind: input, shape index: {}]
  %s6 = inlined_call_operand.hbm [shape: f32[32,128], index: 6, kind: output, shape index: {}]
  %s7 = sld [smem:[#allocation0]]
  $region46: #{tpu_custom_call.1} parent=0
    _
  %s9 = ssub.s32 1, %s7
  %s10 = scalar_select 0, %s9, %s7
  $region1: #{tpu_custom_call.1} parent=0
    #allocation2 [shape = 'u8[16384]{0}', space=vmem, size = 0x4000, scoped, tag = 'input window, operand 0, single buffered']
    #allocation3 [shape = 's32[1]{0}', space=sflag, size = 0x4, scoped, tag = 'scoped memory for tpu_custom_call.1']
    #allocation4 [shape = 's32[1]{0}', space=sflag, size = 0x4, scoped, tag = 'scoped memory for tpu_custom_call.1']
    #allocation5 [shape = 'u8[16384]{0}', space=vmem, size = 0x4000, scoped, tag = 'input window, operand 1, single buffered']
    #allocation6 [shape = 's32[1]{0}', space=sflag, size = 0x4, scoped, tag = 'scoped memory for tpu_custom_call.1']
    #allocation7 [shape = 'u8[32768]{0}', space=vmem, size = 0x8000, scoped, tag = 'input window, operand 3, single buffered']
    #allocation8 [shape = 'u8[16384]{0}', space=vmem, size = 0x4000, scoped, tag = 'output window, operand 0, single buffered']
    %11 = vsyncpa [#allocation3], 0
    %12 = vsyncpa [#allocation6], 0
    %13 = vsyncpa [#allocation4], 0
    // Predicated region
    $region2: #{tpu_custom_call.1} parent=1 // pred_check
      _
    $region3: #{tpu_custom_call.1} parent=1 // pred_check_branch
      %15 = sbr.rel (0) target = $region5
    $region4: #{tpu_custom_call.1} parent=1 // pred_region
      %s17 = ssub.s32 512, 512
      %18 = vsyncadd [#allocation3], %s17
      %s19 = sshll.u32 [#allocation2], 4
      %s20 = int_to_ptr.vmem [resolvable:$true] %s19
      %25 = dma.hbm_to_vmem [thread:$0]  %s0, 512, %s20, [#allocation3], 128, 128, 8
    $region5: #{tpu_custom_call.1} parent=1 // pred_fallthru
      _
    // Predicated region
    $region6: #{tpu_custom_call.1} parent=1 // pred_check
      _
    $region7: #{tpu_custom_call.1} parent=1 // pred_check_branch
      %27 = sbr.rel (0) target = $region9
    $region8: #{tpu_custom_call.1} parent=1 // pred_region
      %s29 = ssub.s32 512, 512
      %30 = vsyncadd [#allocation6], %s29
      %s31 = sshll.u32 [#allocation5], 4
      %s32 = int_to_ptr.vmem [resolvable:$true] %s31
      %37 = dma.hbm_to_vmem [thread:$0]  %s1, 512, %s32, [#allocation6], 128, 128, 8
    $region9: #{tpu_custom_call.1} parent=1 // pred_fallthru
      _
    // Predicated region
    $region10: #{tpu_custom_call.1} parent=1 // pred_check
      _
    $region11: #{tpu_custom_call.1} parent=1 // pred_check_branch
      %39 = sbr.rel (0) target = $region13
    $region12: #{tpu_custom_call.1} parent=1 // pred_region
      _
    $region13: #{tpu_custom_call.1} parent=1 // pred_fallthru
      _
    // Predicated region
    $region14: #{tpu_custom_call.1} parent=1 // pred_check
      _
    $region15: #{tpu_custom_call.1} parent=1 // pred_check_branch
      %41 = sbr.rel (0) target = $region17
    $region16: #{tpu_custom_call.1} parent=1 // pred_region
      %s43 = ssub.s32 1024, 1024
      %44 = vsyncadd [#allocation6], %s43
      %s45 = sshll.u32 [#allocation7], 4
      %s46 = int_to_ptr.vmem [resolvable:$true] %s45
      %51 = dma.hbm_to_vmem [thread:$0]  %s3, 1024, %s46, [#allocation6], 128, 128, 8
    $region17: #{tpu_custom_call.1} parent=1 // pred_fallthru
      _
    // Predicated region
    $region18: #{tpu_custom_call.1} parent=1 // pred_check
      _
    $region19: #{tpu_custom_call.1} parent=1 // pred_check_branch
      %53 = sbr.rel (0) target = $region21
    $region20: #{tpu_custom_call.1} parent=1 // pred_region
      _
    $region21: #{tpu_custom_call.1} parent=1 // pred_fallthru
      _
    // Predicated region
    $region22: #{tpu_custom_call.1} parent=1 // pred_check
      _
    $region23: #{tpu_custom_call.1} parent=1 // pred_check_branch
      %55 = sbr.rel (0) target = $region25
    $region24: #{tpu_custom_call.1} parent=1 // pred_region
      _
    $region25: #{tpu_custom_call.1} parent=1 // pred_fallthru
      _
    // Predicated region
    $region26: #{tpu_custom_call.1} parent=1 // pred_check
      _
    $region27: #{tpu_custom_call.1} parent=1 // pred_check_branch
      %57 = sbr.rel (0) target = $region29
    $region28: #{tpu_custom_call.1} parent=1 // pred_region
      %58 = dma.done [#allocation3], 512
    $region29: #{tpu_custom_call.1} parent=1 // pred_fallthru
      _
    // Predicated region
    $region30: #{tpu_custom_call.1} parent=1 // pred_check
      _
    $region31: #{tpu_custom_call.1} parent=1 // pred_check_branch
      %60 = sbr.rel (0) target = $region33
    $region32: #{tpu_custom_call.1} parent=1 // pred_region
      %61 = dma.done [#allocation6], 512
    $region33: #{tpu_custom_call.1} parent=1 // pred_fallthru
      _
    // Predicated region
    $region34: #{tpu_custom_call.1} parent=1 // pred_check
      _
    $region35: #{tpu_custom_call.1} parent=1 // pred_check_branch
      %63 = sbr.rel (0) target = $region37
    $region36: #{tpu_custom_call.1} parent=1 // pred_region
      %64 = dma.done [#allocation6], 1024
    $region37: #{tpu_custom_call.1} parent=1 // pred_fallthru
      _
    %v67 = vld [vmem:[#allocation2] sm:$0xff]
    %v68 = vld [vmem:[#allocation2 + $0x8] sm:$0xff]
    %v69 = vld [vmem:[#allocation2 + $0x10] sm:$0xff]
    %v70 = vld [vmem:[#allocation2 + $0x18] sm:$0xff]
    %v71 = vld [vmem:[#allocation5] sm:$0xff]
    %v72 = vld [vmem:[#allocation5 + $0x8] sm:$0xff]
    %v73 = vld [vmem:[#allocation5 + $0x10] sm:$0xff]
    %v74 = vld [vmem:[#allocation5 + $0x18] sm:$0xff]
    %v75 = vld [vmem:[%s2] sm:$0x1]
    %v77 = vlaneseq
    %v78 = vshrl.u32 %v77, 7
    %v79 = vsub.s32 0, %v78
    %v80 = vrot.slane %v75, %v79
    %vm82 = vcmask 261120
    %v84 = vsel %vm82, %v67, 0
    %v87 = vsel %vm82, %v68, 0
    %v90 = vsel %vm82, %v69, 0
    %v93 = vsel %vm82, %v70, 0
    %95 = vmatprep.subr.mxu0 0.0
    %96 = vmatpush1.msra.mxu0 %v71
    %97 = vmatprep.subr.mxu0 0.0
    %98 = vmatpush1.msra.mxu0 %v72
    %99 = vmatprep.subr.mxu0 0.0
    %100 = vmatpush1.msra.mxu0 %v73
    %101 = vmatprep.subr.mxu0 0.0
    %102 = vmatpush1.msra.mxu0 %v74
    %103 = vmatprep.subr.mxu0 0.0
    %104 = vmatpush1.msra.mxu0 0.0
    %105 = vmatprep.subr.mxu0 0.0
    %106 = vmatpush1.msra.mxu0 0.0
    %107 = vmatprep.subr.mxu0 0.0
    %108 = vmatpush1.msra.mxu0 0.0
    %109 = vmatprep.subr.mxu0 0.0
    %110 = vmatpush1.msra.mxu0 0.0
    %111 = vmatprep.subr.mxu0 0.0
    %112 = vmatpush1.msra.mxu0 0.0
    %113 = vmatprep.subr.mxu0 0.0
    %114 = vmatpush1.msra.mxu0 0.0
    %115 = vmatprep.subr.mxu0 0.0
    %116 = vmatpush1.msra.mxu0 0.0
    %117 = vmatprep.subr.mxu0 0.0
    %118 = vmatpush1.msra.mxu0 0.0
    %119 = vmatprep.subr.mxu0 0.0
    %120 = vmatpush1.msra.mxu0 0.0
    %121 = vmatprep.subr.mxu0 0.0
    %122 = vmatpush1.msra.mxu0 0.0
    %123 = vmatprep.subr.mxu0 0.0
    %124 = vmatpush1.msra.mxu0 0.0
    %125 = vmatprep.subr.mxu0 0.0
    %126 = vmatpush1.msra.mxu0 0.0
    %127 = vmatprep.subr.mxu0 0.0
    %128 = vmatpush1.msra.mxu0 0.0
    %129 = vmatprep.subr.mxu0 0.0
    %130 = vmatpush1.msra.mxu0 0.0
    %131 = vmatprep.subr.mxu0 0.0
    %132 = vmatpush1.msra.mxu0 0.0
    %133 = vmatprep.subr.mxu0 0.0
    %134 = vmatpush1.msra.mxu0 0.0
    %135 = vmatprep.subr.mxu0 0.0
    %136 = vmatpush1.msra.mxu0 0.0
    %137 = vmatprep.subr.mxu0 0.0
    %138 = vmatpush1.msra.mxu0 0.0
    %139 = vmatprep.subr.mxu0 0.0
    %140 = vmatpush1.msra.mxu0 0.0
    %141 = vmatprep.subr.mxu0 0.0
    %142 = vmatpush1.msra.mxu0 0.0
    %143 = vmatprep.subr.mxu0 0.0
    %144 = vmatpush1.msra.mxu0 0.0
    %145 = vmatprep.subr.mxu0 0.0
    %146 = vmatpush1.msra.mxu0 0.0
    %147 = vmatprep.subr.mxu0 0.0
    %148 = vmatpush1.msra.mxu0 0.0
    %149 = vmatprep.subr.mxu0 0.0
    %150 = vmatpush1.msra.mxu0 0.0
    %151 = vmatprep.subr.mxu0 0.0
    %152 = vmatpush1.msra.mxu0 0.0
    %153 = vmatprep.subr.mxu0 0.0
    %154 = vmatpush1.msra.mxu0 0.0
    %155 = vmatprep.subr.mxu0 0.0
    %156 = vmatpush1.msra.mxu0 0.0
    %157 = vmatprep.subr.mxu0 0.0
    %158 = vmatpush1.msra.mxu0 0.0
    %159 = vmatprep.mubr.f32.mxu0 0.0
    %160 = vmatmul.mubr.f32.gmra.mrb[0].mxu0 %v84
    %v161 = vpop.f32.mrb[0].mxu0
    %v162 = vadd.f32 %v80, %v161
    %v163 = vpop.f32.mrb[0].mxu0
    %164 = vmatprep.mubr.f32.mxu0 0.0
    %165 = vmatmul.mubr.f32.gmra.mrb[0].mxu0 %v87
    %v166 = vpop.f32.mrb[0].mxu0
    %v167 = vadd.f32 %v80, %v166
    %v168 = vpop.f32.mrb[0].mxu0
    %169 = vmatprep.mubr.f32.mxu0 0.0
    %170 = vmatmul.mubr.f32.gmra.mrb[0].mxu0 %v90
    %v171 = vpop.f32.mrb[0].mxu0
    %v172 = vadd.f32 %v80, %v171
    %v173 = vpop.f32.mrb[0].mxu0
    %174 = vmatprep.mubr.f32.mxu0 0.0
    %175 = vmatmul.mubr.f32.gmra.mrb[0].mxu0 %v93
    %v176 = vpop.f32.mrb[0].mxu0
    %v177 = vadd.f32 %v80, %v176
    %v178 = vpop.f32.mrb[0].mxu0
    %179 = vdwg.mxu0
    %v180 = vmax.f32 %v162, 0.0
    %v181 = vmax.f32 %v167, 0.0
    %v182 = vmax.f32 %v172, 0.0
    %v183 = vmax.f32 %v177, 0.0
    %v184 = vld [vmem:[#allocation7] sm:$0xff]
    %v185 = vld [vmem:[#allocation7 + $0x8] sm:$0xff]
    %v186 = vld [vmem:[#allocation7 + $0x10] sm:$0xff]
    %v187 = vld [vmem:[#allocation7 + $0x18] sm:$0xff]
    %v188 = vld [vmem:[#allocation7 + $0x20] sm:$0xff]
    %v189 = vld [vmem:[#allocation7 + $0x28] sm:$0xff]
    %v190 = vld [vmem:[#allocation7 + $0x30] sm:$0xff]
    %v191 = vld [vmem:[#allocation7 + $0x38] sm:$0xff]
    %v192 = vld [vmem:[%s4] sm:$0x1]
    %v194 = vlaneseq
    %v195 = vshrl.u32 %v194, 7
    %v196 = vsub.s32 0, %v195
    %v197 = vrot.slane %v192, %v196
    %vm199 = vcmask 523264
    %v201 = vsel %vm199, %v180, 0
    %v204 = vsel %vm199, %v181, 0
    %v207 = vsel %vm199, %v182, 0
    %v210 = vsel %vm199, %v183, 0
    %212 = vmatprep.subr.mxu0 0.0
    %213 = vmatpush1.msra.mxu0 %v184
    %214 = vmatprep.subr.mxu0 0.0
    %215 = vmatpush1.msra.mxu0 %v185
    %216 = vmatprep.subr.mxu0 0.0
    %217 = vmatpush1.msra.mxu0 %v186
    %218 = vmatprep.subr.mxu0 0.0
    %219 = vmatpush1.msra.mxu0 %v187
    %220 = vmatprep.subr.mxu0 0.0
    %221 = vmatpush1.msra.mxu0 %v188
    %222 = vmatprep.subr.mxu0 0.0
    %223 = vmatpush1.msra.mxu0 %v189
    %224 = vmatprep.subr.mxu0 0.0
    %225 = vmatpush1.msra.mxu0 %v190
    %226 = vmatprep.subr.mxu0 0.0
    %227 = vmatpush1.msra.mxu0 %v191
    %228 = vmatprep.subr.mxu0 0.0
    %229 = vmatpush1.msra.mxu0 0.0
    %230 = vmatprep.subr.mxu0 0.0
    %231 = vmatpush1.msra.mxu0 0.0
    %232 = vmatprep.subr.mxu0 0.0
    %233 = vmatpush1.msra.mxu0 0.0
    %234 = vmatprep.subr.mxu0 0.0
    %235 = vmatpush1.msra.mxu0 0.0
    %236 = vmatprep.subr.mxu0 0.0
    %237 = vmatpush1.msra.mxu0 0.0
    %238 = vmatprep.subr.mxu0 0.0
    %239 = vmatpush1.msra.mxu0 0.0
    %240 = vmatprep.subr.mxu0 0.0
    %241 = vmatpush1.msra.mxu0 0.0
    %242 = vmatprep.subr.mxu0 0.0
    %243 = vmatpush1.msra.mxu0 0.0
    %244 = vmatprep.subr.mxu0 0.0
    %245 = vmatpush1.msra.mxu0 0.0
    %246 = vmatprep.subr.mxu0 0.0
    %247 = vmatpush1.msra.mxu0 0.0
    %248 = vmatprep.subr.mxu0 0.0
    %249 = vmatpush1.msra.mxu0 0.0
    %250 = vmatprep.subr.mxu0 0.0
    %251 = vmatpush1.msra.mxu0 0.0
    %252 = vmatprep.subr.mxu0 0.0
    %253 = vmatpush1.msra.mxu0 0.0
    %254 = vmatprep.subr.mxu0 0.0
    %255 = vmatpush1.msra.mxu0 0.0
    %256 = vmatprep.subr.mxu0 0.0
    %257 = vmatpush1.msra.mxu0 0.0
    %258 = vmatprep.subr.mxu0 0.0
    %259 = vmatpush1.msra.mxu0 0.0
    %260 = vmatprep.subr.mxu0 0.0
    %261 = vmatpush1.msra.mxu0 0.0
    %262 = vmatprep.subr.mxu0 0.0
    %263 = vmatpush1.msra.mxu0 0.0
    %264 = vmatprep.subr.mxu0 0.0
    %265 = vmatpush1.msra.mxu0 0.0
    %266 = vmatprep.subr.mxu0 0.0
    %267 = vmatpush1.msra.mxu0 0.0
    %268 = vmatprep.subr.mxu0 0.0
    %269 = vmatpush1.msra.mxu0 0.0
    %270 = vmatprep.subr.mxu0 0.0
    %271 = vmatpush1.msra.mxu0 0.0
    %272 = vmatprep.subr.mxu0 0.0
    %273 = vmatpush1.msra.mxu0 0.0
    %274 = vmatprep.subr.mxu0 0.0
    %275 = vmatpush1.msra.mxu0 0.0
    %276 = vmatprep.mubr.f32.mxu0 0.0
    %277 = vmatmul.mubr.f32.gmra.mrb[0].mxu0 %v201
    %v278 = vpop.f32.mrb[0].mxu0
    %v279 = vadd.f32 %v197, %v278
    %v280 = vpop.f32.mrb[0].mxu0
    %281 = vmatprep.mubr.f32.mxu0 0.0
    %282 = vmatmul.mubr.f32.gmra.mrb[0].mxu0 %v204
    %v283 = vpop.f32.mrb[0].mxu0
    %v284 = vadd.f32 %v197, %v283
    %v285 = vpop.f32.mrb[0].mxu0
    %286 = vmatprep.mubr.f32.mxu0 0.0
    %287 = vmatmul.mubr.f32.gmra.mrb[0].mxu0 %v207
    %v288 = vpop.f32.mrb[0].mxu0
    %v289 = vadd.f32 %v197, %v288
    %v290 = vpop.f32.mrb[0].mxu0
    %291 = vmatprep.mubr.f32.mxu0 0.0
    %292 = vmatmul.mubr.f32.gmra.mrb[0].mxu0 %v210
    %v293 = vpop.f32.mrb[0].mxu0
    %v294 = vadd.f32 %v197, %v293
    %v295 = vpop.f32.mrb[0].mxu0
    %296 = vdwg.mxu0
    %v297 = vld [vmem:[%s5] sm:$0xff]
    %vm298 = vnez %v297
    %v299 = vsel %vm298, 16843009, 0
    %v300 = vunpack.c.0.s8 %v299
    %v301 = vunpack.c.1.s8 %v299
    %v302 = vunpack.c.2.s8 %v299
    %v303 = vunpack.c.3.s8 %v299
    %v304 = vpack.c.b16 %v300, %v300
    %v305 = vpack.c.b8 %v304, %v304
    %v306 = vpack.c.b16 %v301, %v301
    %v307 = vpack.c.b8 %v306, %v306
    %v308 = vpack.c.b16 %v302, %v302
    %v309 = vpack.c.b8 %v308, %v308
    %v310 = vpack.c.b16 %v303, %v303
    %v311 = vpack.c.b8 %v310, %v310
    %vm312 = vnez %v305
    %vm313 = vnez %v307
    %vm314 = vnez %v309
    %vm315 = vnez %v311
    %v316 = vsel %vm312, 16843009, 0
    %v317 = vsel %vm313, 16843009, 0
    %v318 = vsel %vm314, 16843009, 0
    %v319 = vsel %vm315, 16843009, 0
    %v320 = vunpack.c.0.s8 %v316
    %v321 = vunpack.c.0.s8 %v317
    %v322 = vunpack.c.0.s8 %v318
    %v323 = vunpack.c.0.s8 %v319
    %vm324 = vcmp.ne.s32.totalorder %v320, 0
    %vm325 = vcmp.ne.s32.totalorder %v321, 0
    %vm326 = vcmp.ne.s32.totalorder %v322, 0
    %vm327 = vcmp.ne.s32.totalorder %v323, 0
    %v328 = vsel %vm324, %v279, -1e+09
    %v329 = vsel %vm325, %v284, -1e+09
    %v330 = vsel %vm326, %v289, -1e+09
    %v331 = vsel %vm327, %v294, -1e+09
    %332 = vst [vmem:[#allocation8] sm:$0xff] %v328
    %333 = vst [vmem:[#allocation8 + $0x8] sm:$0xff] %v329
    %334 = vst [vmem:[#allocation8 + $0x10] sm:$0xff] %v330
    %335 = vst [vmem:[#allocation8 + $0x18] sm:$0xff] %v331
    // Predicated region
    $region38: #{tpu_custom_call.1} parent=1 // pred_check
      _
    $region39: #{tpu_custom_call.1} parent=1 // pred_check_branch
      %337 = sbr.rel (0) target = $region41
    $region40: #{tpu_custom_call.1} parent=1 // pred_region
      %s339 = ssub.s32 512, 512
      %340 = vsyncadd [#allocation4], %s339
      %s341 = sshll.u32 [#allocation8], 4
      %s342 = int_to_ptr.vmem [resolvable:$true] %s341
      %347 = dma.vmem_to_hbm [thread:$0]  %s342, 512, %s6, [#allocation4], 128, 128, 8
    $region41: #{tpu_custom_call.1} parent=1 // pred_fallthru
      _
    // Predicated region
    $region42: #{tpu_custom_call.1} parent=1 // pred_check
      _
    $region43: #{tpu_custom_call.1} parent=1 // pred_check_branch
      %349 = sbr.rel (0) target = $region45
    $region44: #{tpu_custom_call.1} parent=1 // pred_region
      %350 = dma.done [#allocation4], 512
    $region45: #{tpu_custom_call.1} parent=1 // pred_fallthru
      _
    %351 = vsyncpa [#allocation3], 1
    %352 = vsyncpa [#allocation6], 1
    %353 = vsyncpa [#allocation4], 1

</llo_original>
